<compile_context>
chip_gen: v6e
topology: v6e:2x2x1
jax: 0.10.0
libtpu: 0.0.40
codegen_flags: <defaults>
</compile_context>

<pallas_src>
import functools

import jax
import jax.numpy as jnp
from jax.experimental import pallas as pl
from jax.experimental.pallas import tpu as pltpu


# ----------------------- fused (small N*D) kernels -----------------------

def _fused_mean_kernel(x_ref, o_ref, sem):
    """CLS = mean over token axis (f32 accumulate). One (bt, N, D) block."""
    # Body rows via VMEM-local DMA (handles the +1 sublane shift off the
    # vector/XLU slots), overlapped with the mean computation.
    cp = pltpu.make_async_copy(x_ref, o_ref.at[:, 1:, :], sem)
    cp.start()
    x = x_ref[...]                                                  # (bt, N, D)
    cls = jnp.mean(x.astype(jnp.float32), axis=1, keepdims=True)    # (bt, 1, D) f32
    o_ref[:, 0:1, :] = cls.astype(o_ref.dtype)
    cp.wait()


def _fused_learned_kernel(cls_ref, x_ref, o_ref, sem):
    """CLS = learned (1,1,D) token broadcast over batch. One (bt, N, D) block."""
    cp = pltpu.make_async_copy(x_ref, o_ref.at[:, 1:, :], sem)
    cp.start()
    bt, d = o_ref.shape[0], o_ref.shape[2]
    o_ref[:, 0:1, :] = jnp.broadcast_to(cls_ref[...], (bt, 1, d)).astype(o_ref.dtype)
    cp.wait()


# ----------------------- token-tiled (large N*D) kernels -----------------------

def _copy_rows(x_view, o_hbm, b, row_start, nrows, sem):
    """DMA `nrows` token rows of batch element b into output rows [row_start, ...)."""
    cp = pltpu.make_async_copy(
        x_view, o_hbm.at[pl.ds(b, 1), pl.ds(row_start, nrows), :], sem)
    cp.start()
    return cp


def _tiled_mean_kernel(x_ref, o_hbm, acc_ref, cls_ref, sem, *, n_tokens, tn, tail):
    """Mean-CLS with token-axis tiling; manual writeback (output lives in HBM)."""
    b = pl.program_id(0)
    t = pl.program_id(1)
    n_t = pl.num_programs(1)

    @pl.when(t == 0)
    def _():
        acc_ref[...] = jnp.zeros_like(acc_ref)

    if tail == tn:
        # All token blocks are full.
        cp = _copy_rows(x_ref, o_hbm, b, 1 + t * tn, tn, sem)
        acc_ref[...] += jnp.sum(x_ref[...].astype(jnp.float32), axis=1, keepdims=True)
        cp.wait()
    else:
        @pl.when(t < n_t - 1)
        def _():
            cp = _copy_rows(x_ref, o_hbm, b, 1 + t * tn, tn, sem)
            acc_ref[...] += jnp.sum(x_ref[...].astype(jnp.float32),
                                    axis=1, keepdims=True)
            cp.wait()

        @pl.when(t == n_t - 1)
        def _():
            # Ragged tail: only the first `tail` rows of the block are valid.
            cp = _copy_rows(x_ref.at[:, :tail, :], o_hbm, b, 1 + t * tn, tail, sem)
            acc_ref[...] += jnp.sum(x_ref[:, :tail, :].astype(jnp.float32),
                                    axis=1, keepdims=True)
            cp.wait()

    @pl.when(t == n_t - 1)
    def _():
        cls_ref[...] = (acc_ref[...] * (1.0 / n_tokens)).astype(cls_ref.dtype)
        cp = pltpu.make_async_copy(
            cls_ref, o_hbm.at[pl.ds(b, 1), pl.ds(0, 1), :], sem)
        cp.start()
        cp.wait()


def _tiled_learned_kernel(cls_ref, x_ref, o_hbm, sem, *, tn, tail):
    """Learned-CLS with token-axis tiling; manual writeback (output lives in HBM)."""
    b = pl.program_id(0)
    t = pl.program_id(1)
    n_t = pl.num_programs(1)

    if tail == tn:
        cp = _copy_rows(x_ref, o_hbm, b, 1 + t * tn, tn, sem)
        cp.wait()
    else:
        @pl.when(t < n_t - 1)
        def _():
            cp = _copy_rows(x_ref, o_hbm, b, 1 + t * tn, tn, sem)
            cp.wait()

        @pl.when(t == n_t - 1)
        def _():
            cp = _copy_rows(x_ref.at[:, :tail, :], o_hbm, b, 1 + t * tn, tail, sem)
            cp.wait()

    @pl.when(t == 0)
    def _():
        cp = pltpu.make_async_copy(
            cls_ref, o_hbm.at[pl.ds(b, 1), pl.ds(0, 1), :], sem)
        cp.start()
        cp.wait()


# ----------------------- helpers -----------------------

def _num_tensorcores():
    """Best-effort TensorCore count per device (1 on v5e/v6e, 2 on v4/v5p/v7x)."""
    try:
        dev = jax.devices()[0]
        n = getattr(dev, "num_cores", None)
        if isinstance(n, int) and n > 0:
            return n
        kind = str(getattr(dev, "device_kind", "")).lower()
        if "lite" in kind or "v5e" in kind or "v6" in kind:
            return 1
        if "v4" in kind or "v5" in kind or "v7" in kind:
            return 2
    except Exception:
        pass
    return 1


def _choose_batch_tile(B, per_batch_bytes, max_block_bytes, num_cores):
    """Largest batch tile whose input block fits the budget; on 2-TC chips keep
    at least `num_cores` grid steps (preferably an even split)."""
    bt = max(1, min(B, max_block_bytes // max(1, per_batch_bytes)))
    if num_cores > 1 and B >= num_cores:
        bt = min(bt, max(1, B // num_cores))
        while bt > 1 and pl.cdiv(B, bt) % num_cores != 0:
            bt -= 1
    return bt


def _vmem_limit(needed_bytes):
    """Raise the scoped-VMEM limit only when the double-buffered footprint needs it."""
    if needed_bytes <= (16 << 20):
        return None
    return int(min(48 << 20, needed_bytes))


# ----------------------- wrapper -----------------------

def patch_embedding(feats, cls_token=None, cls_learned=False, *, max_block_bytes=None):
    """Pallas equivalent of PatchEmbedding.forward.

    feats:     (B, N, D)
    cls_token: (1, 1, D) required iff cls_learned=True
    returns:   (B, N+1, D)
    """
    B, N, D = feats.shape
    itemsize = feats.dtype.itemsize
    num_cores = _num_tensorcores()
    if max_block_bytes is None:
        # ~4 MiB input blocks on 2-TC chips (v7x: 64 MiB VMEM), ~8 MiB on 1-TC chips.
        max_block_bytes = (4 << 20) if num_cores > 1 else (8 << 20)

    out_shape = jax.ShapeDtypeStruct((B, N + 1, D), feats.dtype)
    per_batch_bytes = N * D * itemsize
    cost = pl.CostEstimate(flops=B * N * D, transcendentals=0,
                           bytes_accessed=(2 * B * N * D + B * D) * itemsize)

    if cls_learned:
        assert cls_token is not None and cls_token.shape == (1, 1, D)
        cls_token = cls_token.astype(feats.dtype)

    use_tiled = (per_batch_bytes > max_block_bytes) and (N > 8)

    if not use_tiled:
        # ---------- fused path: one (bt, N, D) block per grid step ----------
        bt = _choose_batch_tile(B, per_batch_bytes, max_block_bytes, num_cores)
        grid = (pl.cdiv(B, bt),)
        in_bytes = bt * per_batch_bytes
        out_bytes = bt * (N + 1) * D * itemsize
        cparams = pltpu.CompilerParams(
            dimension_semantics=("parallel",),
            vmem_limit_bytes=_vmem_limit(2 * (in_bytes + out_bytes) + (2 << 20)))

        x_spec = pl.BlockSpec((bt, N, D), lambda b: (b, 0, 0))
        o_spec = pl.BlockSpec((bt, N + 1, D), lambda b: (b, 0, 0))

        if not cls_learned:
            return pl.pallas_call(
                _fused_mean_kernel,
                out_shape=out_shape,
                grid_spec=pltpu.PrefetchScalarGridSpec(
                    num_scalar_prefetch=0, grid=grid,
                    in_specs=[x_spec], out_specs=o_spec,
                    scratch_shapes=[pltpu.SemaphoreType.DMA]),
                compiler_params=cparams, cost_estimate=cost,
            )(feats)
        else:
            cls_spec = pl.BlockSpec((1, 1, D), lambda b: (0, 0, 0))
            return pl.pallas_call(
                _fused_learned_kernel,
                out_shape=out_shape,
                grid_spec=pltpu.PrefetchScalarGridSpec(
                    num_scalar_prefetch=0, grid=grid,
                    in_specs=[cls_spec, x_spec], out_specs=o_spec,
                    scratch_shapes=[pltpu.SemaphoreType.DMA]),
                compiler_params=cparams, cost_estimate=cost,
            )(cls_token, feats)

    # ---------- token-tiled path: (1, tn, D) input blocks, manual writeback ----------
    # (D is kept whole: one row of typical ViT embed dims is only a few KiB.)
    rows_budget = max(8, (max_block_bytes // max(1, D * itemsize)) // 8 * 8)
    tn = max(8, min(int(rows_budget), (N // 8) * 8))
    n_t = pl.cdiv(N, tn)
    tail = N - (n_t - 1) * tn

    cparams = pltpu.CompilerParams(
        dimension_semantics=("parallel", "arbitrary"),
        vmem_limit_bytes=_vmem_limit(2 * tn * D * itemsize + 4 * D * 8 + (2 << 20)))

    x_spec = pl.BlockSpec((1, tn, D), lambda b, t: (b, t, 0))
    o_spec = pl.BlockSpec(memory_space=pl.ANY)   # full output stays in HBM; DMA writeback

    if not cls_learned:
        kernel = functools.partial(_tiled_mean_kernel, n_tokens=N, tn=tn, tail=tail)
        return pl.pallas_call(
            kernel,
            out_shape=out_shape,
            grid_spec=pltpu.PrefetchScalarGridSpec(
                num_scalar_prefetch=0, grid=(B, n_t),
                in_specs=[x_spec], out_specs=o_spec,
                scratch_shapes=[
                    pltpu.VMEM((1, 1, D), jnp.float32),   # CLS f32 accumulator
                    pltpu.VMEM((1, 1, D), feats.dtype),   # CLS staging (output dtype)
                    pltpu.SemaphoreType.DMA,
                ]),
            compiler_params=cparams, cost_estimate=cost,
        )(feats)
    else:
        cls_spec = pl.BlockSpec((1, 1, D), lambda b, t: (0, 0, 0))
        kernel = functools.partial(_tiled_learned_kernel, tn=tn, tail=tail)
        return pl.pallas_call(
            kernel,
            out_shape=out_shape,
            grid_spec=pltpu.PrefetchScalarGridSpec(
                num_scalar_prefetch=0, grid=(B, n_t),
                in_specs=[cls_spec, x_spec], out_specs=o_spec,
                scratch_shapes=[pltpu.SemaphoreType.DMA]),
            compiler_params=cparams, cost_estimate=cost,
        )(cls_token, feats)


# ----------------------- main -----------------------

if __name__ == "__main__":
    key = jax.random.PRNGKey(0)
    k_feats, k_cls, k_feats2 = jax.random.split(key, 3)
    D = 128   # lane-dense minor dim

    def ref_mean(f):
        return jnp.concatenate([jnp.mean(f, axis=1, keepdims=True), f], axis=1)

    def ref_learned(f, c):
        c = c.astype(f.dtype)
        return jnp.concatenate(
            [jnp.broadcast_to(c, (f.shape[0], 1, f.shape[2])), f], axis=1)

    # 1) fused path, mean CLS (default branch of the module)
    feats = jax.random.normal(k_feats, (4, 8, D), dtype=jnp.float32)
    out = jax.block_until_ready(patch_embedding(feats, cls_learned=False))
    assert out.shape == (4, 9, D)
    assert jnp.allclose(out, ref_mean(feats), atol=1e-5, rtol=1e-5)

    # 2) fused path, learned CLS
    cls_token = jax.random.normal(k_cls, (1, 1, D), dtype=jnp.float32)
    out = jax.block_until_ready(
        patch_embedding(feats, cls_token=cls_token, cls_learned=True))
    assert jnp.allclose(out, ref_learned(feats, cls_token), atol=1e-5, rtol=1e-5)

    # 3) fused path with a cdiv (possibly ragged) batch grid: B=3, small budget.
    feats3 = jax.random.normal(k_feats2, (3, 8, D), dtype=jnp.float32)
    out = jax.block_until_ready(
        patch_embedding(feats3, max_block_bytes=2 * 8 * D * 4))
    assert jnp.allclose(out, ref_mean(feats3), atol=1e-5, rtol=1e-5)

    # 4) token-tiled path (forced via tiny block budget), mean CLS.
    #    N=12, tn=8 -> exercises both the full-tile and ragged-tail branches.
    feats_long = jax.random.normal(k_feats, (2, 12, D), dtype=jnp.float32)
    out = jax.block_until_ready(patch_embedding(feats_long, max_block_bytes=1024))
    assert out.shape == (2, 13, D)
    assert jnp.allclose(out, ref_mean(feats_long), atol=1e-5, rtol=1e-5)

    # 5) token-tiled path, learned CLS.
    out = jax.block_until_ready(
        patch_embedding(feats_long, cls_token=cls_token, cls_learned=True,
                        max_block_bytes=1024))
    assert jnp.allclose(out, ref_learned(feats_long, cls_token), atol=1e-5, rtol=1e-5)

    print("KERNEL_OK")
</pallas_src>

<mosaic_0001>
module attributes {stable_mosaic.version = 11 : i64} {
  func.func @_fused_mean_kernel(%arg0: i32, %arg1: memref<4x8x128xf32, #tpu.memory_space<vmem>>, %arg2: memref<4x9x128xf32, #tpu.memory_space<vmem>>, %arg3: memref<!tpu.dma_semaphore, #tpu.memory_space<semaphore_mem>>) attributes {dimension_semantics = [#tpu.dimension_semantics<parallel>], iteration_bounds = array<i64: 1>, scalar_prefetch = 0 : i64, scratch_operands = 1 : i64, tpu.core_type = #tpu.core_type<tc>, window_params = [{transform_indices = @transform_0, window_bounds = array<i64: 4, 8, 128>}, {transform_indices = @transform_1, window_bounds = array<i64: 4, 9, 128>}]} {
    %c0_i32 = arith.constant 0 : i32
    %c1_i32 = arith.constant 1 : i32
    %c0_i32_0 = arith.constant 0 : i32
    %0 = tpu.memref_slice %arg2[%c0_i32, %c1_i32, %c0_i32_0] : memref<4x9x128xf32, #tpu.memory_space<vmem>> -> memref<4x8x128xf32, #tpu.memory_space<vmem>>
    tpu.enqueue_dma source(%arg1 : memref<4x8x128xf32, #tpu.memory_space<vmem>>) target(%0 : memref<4x8x128xf32, #tpu.memory_space<vmem>>) target_semaphore(%arg3 : memref<!tpu.dma_semaphore, #tpu.memory_space<semaphore_mem>>)
    %c0 = arith.constant 0 : index
    %c0_1 = arith.constant 0 : index
    %c0_2 = arith.constant 0 : index
    %1 = vector.load %arg1[%c0, %c0_1, %c0_2] : memref<4x8x128xf32, #tpu.memory_space<vmem>>, vector<4x8x128xf32>
    %cst = arith.constant dense<0.000000e+00> : vector<4x128xf32>
    %2 = vector.multi_reduction <add>, %1, %cst [1] : vector<4x8x128xf32> to vector<4x128xf32>
    %3 = vector.shape_cast %2 : vector<4x128xf32> to vector<4x1x128xf32>
    %cst_3 = arith.constant 8.000000e+00 : f32
    %4 = vector.broadcast %cst_3 : f32 to vector<4x1x128xf32>
    %5 = arith.divf %3, %4 : vector<4x1x128xf32>
    %c0_4 = arith.constant 0 : index
    %c0_5 = arith.constant 0 : index
    %c0_6 = arith.constant 0 : index
    %6 = vector.load %arg2[%c0_4, %c0_5, %c0_6] : memref<4x9x128xf32, #tpu.memory_space<vmem>>, vector<4x1x128xf32>
    tpu.vector_store %arg2[%c0_4, %c0_5, %c0_6], %5 {strides = array<i32>} : memref<4x9x128xf32, #tpu.memory_space<vmem>>, vector<4x1x128xf32>,
    %c0_i32_7 = arith.constant 0 : i32
    %c1_i32_8 = arith.constant 1 : i32
    %c0_i32_9 = arith.constant 0 : i32
    %7 = tpu.memref_slice %arg2[%c0_i32_7, %c1_i32_8, %c0_i32_9] : memref<4x9x128xf32, #tpu.memory_space<vmem>> -> memref<4x8x128xf32, #tpu.memory_space<vmem>>
    tpu.wait_dma2 semaphore(%arg3 : memref<!tpu.dma_semaphore, #tpu.memory_space<semaphore_mem>>) src(%arg1 : memref<4x8x128xf32, #tpu.memory_space<vmem>>) dst(%7 : memref<4x8x128xf32, #tpu.memory_space<vmem>>)
    return
  }
  func.func @transform_0(%arg0: i32) -> (i32, i32, i32) {
    %c0_i32 = arith.constant 0 : i32
    %c0_i32_0 = arith.constant 0 : i32
    %c0_i32_1 = arith.constant 0 : i32
    return %arg0, %c0_i32, %c0_i32_0 : i32, i32, i32
  }
  func.func @transform_1(%arg0: i32) -> (i32, i32, i32) {
    %c0_i32 = arith.constant 0 : i32
    %c0_i32_0 = arith.constant 0 : i32
    %c0_i32_1 = arith.constant 0 : i32
    return %arg0, %c0_i32, %c0_i32_0 : i32, i32, i32
  }
}

</mosaic_0001>

<llo_original>
// kernel: tpu_custom_call.1
$region0: #{tpu_custom_call.1}
  #allocation0 [shape = 'u32[]', space=smem, size = 0x4, offset = 0x4, fixed_abs, tag = 'smem constant byte address 0x4 - core index']
  #allocation1 [shape = 'u32[144,128]{1,0:T(1,128)}', space=vmem, size = 0x12000, scoped, tag = 'internal scratch']
  #allocation2 [shape = 's32[1]{0}', space=sflag, size = 0x4, scoped, tag = 'scratch operand']
  #allocation5 [shape = 's32[]', space=sflag, size = 0x4, offset = 0, fixed_abs, tag = 'sflag constant byte address 0x0 - dummy sync flag']
  %s0 = inlined_call_operand.hbm [shape: f32[4,8,128], index: 0, kind: input, shape index: {}]
  %s1 = inlined_call_operand.vmem [shape: f32[4,9,128], index: 1, kind: output, shape index: {}]
  %s2 = sld [smem:[#allocation0]]
  $region52: #{tpu_custom_call.1} parent=0
    _
  %s4 = ssub.s32 1, %s2
  %s5 = scalar_select 0, %s4, %s2
  $region1: #{tpu_custom_call.1} parent=0
    #allocation3 [shape = 'u8[16384]{0}', space=vmem, size = 0x4000, scoped, tag = 'input window, operand 0, single buffered']
    #allocation4 [shape = 's32[1]{0}', space=sflag, size = 0x4, scoped, tag = 'scoped memory for tpu_custom_call.1']
    %6 = vsyncpa [#allocation4], 0
    // Predicated region
    $region2: #{tpu_custom_call.1} parent=1 // pred_check
      _
    $region3: #{tpu_custom_call.1} parent=1 // pred_check_branch
      %8 = sbr.rel (0) target = $region5
    $region4: #{tpu_custom_call.1} parent=1 // pred_region
      %s10 = ssub.s32 512, 512
      %11 = vsyncadd [#allocation4], %s10
      %s12 = sshll.u32 [#allocation3], 4
      %s13 = int_to_ptr.vmem [resolvable:$true] %s12
      %18 = dma.hbm_to_vmem [thread:$0]  %s0, 512, %s13, [#allocation4], 128, 128, 8
    $region5: #{tpu_custom_call.1} parent=1 // pred_fallthru
      _
    // Predicated region
    $region6: #{tpu_custom_call.1} parent=1 // pred_check
      _
    $region7: #{tpu_custom_call.1} parent=1 // pred_check_branch
      %20 = sbr.rel (0) target = $region9
    $region8: #{tpu_custom_call.1} parent=1 // pred_region
      %21 = dma.done [#allocation4], 512
    $region9: #{tpu_custom_call.1} parent=1 // pred_fallthru
      _
    %s22 = scalar_lea.vmem %s1, 1
    %p24 = scmp.lt.u32.totalorder 8, 8
    %p25 = pneg %p24
    // Predicated region
    $region10: #{tpu_custom_call.1} parent=1 // pred_check
      _
    $region11: #{tpu_custom_call.1} parent=1 // pred_check_branch
      %27 = sbr.rel (%p24) target = $region13
    $region12: #{tpu_custom_call.1} parent=1 // pred_region
      %s49 = sand.u32 8, 7
      %p50 = scmp.eq.s32.totalorder %s49, 0
      // Predicated region
      $region25: #{tpu_custom_call.1} parent=12 // pred_check
        %p51 = pneg %p50
      $region26: #{tpu_custom_call.1} parent=12 // pred_check_branch
        %53 = sbr.rel (%p51) target = $region28
      $region27: #{tpu_custom_call.1} parent=12 // pred_region
        loop: start=0, step=1, limit=1
        $region29: #{tpu_custom_call.1} parent=27 // loop_pre_header
          _
        $region30: #{tpu_custom_call.1} parent=27 // loop_header
          %s55 = sphi 0, %s59
          %p56 = scmp.ge.s32.totalorder %s55, 1
          %s60 = sphi [#allocation3], [#allocation3]
          %s61 = sphi %s22, %s22
        $region31: #{tpu_custom_call.1} parent=27 // loop_header_branch
          %58 = sbr.rel (%p56) target = $region35
        $region32: #{tpu_custom_call.1} parent=27 // loop_body
          %v62 = vld [vmem:[%s60] sm:$0xff]
          %63 = vst [vmem:[%s61] sm:$0xff] %v62
          %v64 = vld [vmem:[%s60 + $0x8] sm:$0xff]
          %65 = vst [vmem:[%s61 + $0x10] sm:$0xff] %v64
          %v66 = vld [vmem:[%s60 + $0x10] sm:$0xff]
          %67 = vst [vmem:[%s61 + $0x20] sm:$0xff] %v66
          %v68 = vld [vmem:[%s60 + $0x18] sm:$0xff]
          %69 = vst [vmem:[%s61 + $0x30] sm:$0xff] %v68
        $region33: #{tpu_custom_call.1} parent=27 // loop_footer
          %s59 = sadd.s32 1, %s55
        $region34: #{tpu_custom_call.1} parent=27 // loop_footer_branch
          %54 = sbr.rel target = $region30
        $region35: #{tpu_custom_call.1} parent=27 // loop_exit
          _
      $region28: #{tpu_custom_call.1} parent=12 // pred_fallthru
        _
      %p70 = pneg %p50
      // Predicated region
      $region36: #{tpu_custom_call.1} parent=12 // pred_check
        _
      $region37: #{tpu_custom_call.1} parent=12 // pred_check_branch
        %72 = sbr.rel (%p50) target = $region39
      $region38: #{tpu_custom_call.1} parent=12 // pred_region
        %s73 = sand.u32 8, 7
      $region39: #{tpu_custom_call.1} parent=12 // pred_fallthru
        _
    $region13: #{tpu_custom_call.1} parent=1 // pred_fallthru
      _
    // Predicated region
    $region14: #{tpu_custom_call.1} parent=1 // pred_check
      %p28 = pneg %p24
    $region15: #{tpu_custom_call.1} parent=1 // pred_check_branch
      %30 = sbr.rel (%p28) target = $region17
    $region16: #{tpu_custom_call.1} parent=1 // pred_region
      %s31 = sshll.u32 1, 8
      %s32 = ssub.s32 %s31, 1
      loop: start=0, step=1, limit=1
      $region18: #{tpu_custom_call.1} parent=16 // loop_pre_header
        _
      $region19: #{tpu_custom_call.1} parent=16 // loop_header
        %s34 = sphi 0, %s38
        %p35 = scmp.ge.s32.totalorder %s34, 1
        %s39 = sphi [#allocation3], [#allocation3]
        %s40 = sphi %s22, %s22
      $region20: #{tpu_custom_call.1} parent=16 // loop_header_branch
        %37 = sbr.rel (%p35) target = $region24
      $region21: #{tpu_custom_call.1} parent=16 // loop_body
        %v41 = vld [vmem:[%s39] sm:%s32]
        %42 = vst [vmem:[%s40] sm:%s32] %v41
        %v43 = vld [vmem:[%s39 + $0x8] sm:%s32]
        %44 = vst [vmem:[%s40 + $0x10] sm:%s32] %v43
        %v45 = vld [vmem:[%s39 + $0x10] sm:%s32]
        %46 = vst [vmem:[%s40 + $0x20] sm:%s32] %v45
        %v47 = vld [vmem:[%s39 + $0x18] sm:%s32]
        %48 = vst [vmem:[%s40 + $0x30] sm:%s32] %v47
      $region22: #{tpu_custom_call.1} parent=16 // loop_footer
        %s38 = sadd.s32 1, %s34
      $region23: #{tpu_custom_call.1} parent=16 // loop_footer_branch
        %33 = sbr.rel target = $region19
      $region24: #{tpu_custom_call.1} parent=16 // loop_exit
        _
    $region17: #{tpu_custom_call.1} parent=1 // pred_fallthru
      _
    // Predicated region
    $region40: #{tpu_custom_call.1} parent=1 // pred_check
      _
    $region41: #{tpu_custom_call.1} parent=1 // pred_check_branch
      %76 = sbr.rel (0) target = $region43
    $region42: #{tpu_custom_call.1} parent=1 // pred_region
      %77 = vsyncadd [#allocation2], 512
    $region43: #{tpu_custom_call.1} parent=1 // pred_fallthru
      _
    %v78 = vld [vmem:[#allocation3] sm:$0xff]
    %v79 = vld [vmem:[#allocation3 + $0x8] sm:$0xff]
    %v80 = vld [vmem:[#allocation3 + $0x10] sm:$0xff]
    %v81 = vld [vmem:[#allocation3 + $0x18] sm:$0xff]
    %v82 = vrot.slane %v78, 4
    %v83 = vadd.f32 %v78, %v82
    %v84 = vrot.slane %v83, 2
    %v85 = vadd.f32 %v83, %v84
    %v86 = vrot.slane %v85, 1
    %v87 = vadd.f32 %v85, %v86
    %v88 = vrot.slane %v79, 4
    %v89 = vadd.f32 %v79, %v88
    %v90 = vrot.slane %v89, 2
    %v91 = vadd.f32 %v89, %v90
    %v92 = vrot.slane %v91, 1
    %v93 = vadd.f32 %v91, %v92
    %v94 = vrot.slane %v80, 4
    %v95 = vadd.f32 %v80, %v94
    %v96 = vrot.slane %v95, 2
    %v97 = vadd.f32 %v95, %v96
    %v98 = vrot.slane %v97, 1
    %v99 = vadd.f32 %v97, %v98
    %v100 = vrot.slane %v81, 4
    %v101 = vadd.f32 %v81, %v100
    %v102 = vrot.slane %v101, 2
    %v103 = vadd.f32 %v101, %v102
    %v104 = vrot.slane %v103, 1
    %v105 = vadd.f32 %v103, %v104
    %v106 = vrcp.pop 8.0
    %v107 = vmul.f32 %v87, %v106
    %v108 = vmul.f32 %v93, %v106
    %v109 = vmul.f32 %v99, %v106
    %v110 = vmul.f32 %v105, %v106
    %111 = vst [vmem:[%s1] sm:$0x1] %v107
    %112 = vst [vmem:[%s1 + $0x10] sm:$0x1] %v108
    %113 = vst [vmem:[%s1 + $0x20] sm:$0x1] %v109
    %114 = vst [vmem:[%s1 + $0x30] sm:$0x1] %v110
    %s115 = smul.u32 4, 8
    %s116 = smul.u32 %s115, 1
    %s117 = sshll.u32 %s116, 4
    %118 = dma.done [#allocation2], %s117
    // Predicated region
    $region44: #{tpu_custom_call.1} parent=1 // pred_check
      _
    $region45: #{tpu_custom_call.1} parent=1 // pred_check_branch
      %120 = sbr.rel (0) target = $region47
    $region46: #{tpu_custom_call.1} parent=1 // pred_region
      _
    $region47: #{tpu_custom_call.1} parent=1 // pred_fallthru
      _
    // Predicated region
    $region48: #{tpu_custom_call.1} parent=1 // pred_check
      _
    $region49: #{tpu_custom_call.1} parent=1 // pred_check_branch
      %122 = sbr.rel (0) target = $region51
    $region50: #{tpu_custom_call.1} parent=1 // pred_region
      _
    $region51: #{tpu_custom_call.1} parent=1 // pred_fallthru
      _
    %123 = vsyncpa [#allocation4], 1
  %124 = vsyncmov [#allocation2]
  %s125 = vpop.sfrf %124
  %p126 = scmp.eq.s32.totalorder %s125, 0
  %p127 = pneg %p126
  %129 = shalt.err (%p127)

</llo_original>
